<compile_context>
chip_gen: v5e
topology: v5e:2x2
jax: 0.10.0
libtpu: 0.0.40
codegen_flags: <defaults>
</compile_context>

<pallas_src>
import jax
import jax.numpy as jnp
import numpy as np
from jax.experimental import pallas as pl
from jax.experimental.pallas import tpu as pltpu


def _round_up(a, m):
    return ((a + m - 1) // m) * m


def wn_conv2d(x, v, g, b, padding, *, mm_dtype=jnp.bfloat16, l_tile=512):
    """Weight-normalized 2D convolution (stride 1), matching
    nn.utils.weight_norm(nn.Conv2d(...)) forward.

    x: (N, C_in, H, W)        NCHW
    v: (C_out, C_in, KH, KW)  weight_v
    g: (C_out,)               weight_g (PyTorch stores it as (C_out,1,1,1))
    b: (C_out,)               bias
    mm_dtype: MXU operand dtype (bf16 default); accumulation stays float32.
    l_tile:   lanes of output per grid step (multiple of 128).  Sized so the
              per-step footprint stays well under v7x's 64 MiB VMEM.
    returns: (N, C_out, H_out, W_out)
    """
    n, c_in, h, w = x.shape
    c_out, _, kh, kw = v.shape
    hp, wp = h + 2 * padding, w + 2 * padding
    h_out, w_out = hp - kh + 1, wp - kw + 1
    kk = kh * kw

    c_in_pad = _round_up(c_in, 8)                    # dense sublane tiles
    c_out_pad = _round_up(c_out, 8)
    l_body = n * hp * wp                             # batch folded into lanes
    l_tile = _round_up(min(l_tile, _round_up(l_body, 128)), 128)
    num_tiles = (l_body + l_tile - 1) // l_tile
    max_off = (kh - 1) * wp + (kw - 1)               # largest shifted-view offset
    l_win = _round_up(l_tile + max_off, 128)         # per-tile input window
    pad_cols = (num_tiles - 1) * l_tile + l_win

    # ---- weight norm, once, in the wrapper: w = g * v / ||v||_2
    v32 = v.astype(jnp.float32)
    norm = jnp.sqrt(jnp.sum(v32 * v32, axis=(1, 2, 3), keepdims=True))
    wgt = v32 * (g.reshape(-1, 1, 1, 1).astype(jnp.float32) / norm)
    wgt = jnp.pad(wgt, ((0, c_out_pad - c_out), (0, c_in_pad - c_in),
                        (0, 0), (0, 0)))
    # layout (C_out, KK*C_in_pad), tap-major / channel-minor (matches patch)
    w2d = jnp.transpose(wgt, (0, 2, 3, 1)).reshape(
        c_out_pad, kk * c_in_pad).astype(mm_dtype)
    b2d = jnp.pad(b.astype(jnp.float32), (0, c_out_pad - c_out)).reshape(
        c_out_pad, 1)

    # ---- input glue: zero-pad, flatten (C_in, N*Hp*Wp), bf16 cast, and cut
    #      overlapping per-tile windows (overlap is only max_off columns).
    xp = jnp.pad(x, ((0, 0), (0, 0), (padding, padding), (padding, padding)))
    x_flat = jnp.transpose(xp, (1, 0, 2, 3)).reshape(c_in, l_body)
    x_flat = jnp.pad(x_flat, ((0, c_in_pad - c_in),
                              (0, pad_cols - l_body))).astype(mm_dtype)
    col_idx = (jnp.arange(num_tiles)[:, None] * l_tile
               + jnp.arange(l_win)[None, :])
    x_win = jnp.take(x_flat, col_idx, axis=1)        # (C_in_pad, T, l_win)
    x_win = jnp.transpose(x_win, (1, 0, 2))          # (T, C_in_pad, l_win)

    use_patch = c_in_pad < 128   # pack KK taps only while contraction is shallow

    def kernel_patch(x_ref, w_ref, b_ref, o_ref, patch_ref):
        # Gather KH*KW shifted views of the VMEM-resident window into one
        # lane-dense (KK*C_in_pad, l_tile) bf16 patch (static slices), then a
        # single MXU contraction over the folded KK*C_in axis.
        for i in range(kh):
            for j in range(kw):
                k = i * kw + j
                off = i * wp + j
                patch_ref[k * c_in_pad:(k + 1) * c_in_pad, :] = \
                    x_ref[:, off:off + l_tile]
        acc = jnp.dot(w_ref[...], patch_ref[...],
                      preferred_element_type=jnp.float32)
        o_ref[...] = (acc + b_ref[...]).astype(o_ref.dtype)

    def kernel_taps(x_ref, w_ref, b_ref, o_ref):
        # Deep-channel path: each tap already fills an MXU pass, so skip the
        # patch blow-up and accumulate KK per-tap matmuls in f32.
        acc = jnp.zeros((c_out_pad, l_tile), jnp.float32)
        for i in range(kh):
            for j in range(kw):
                k = i * kw + j
                off = i * wp + j
                acc = acc + jnp.dot(
                    w_ref[:, k * c_in_pad:(k + 1) * c_in_pad],
                    x_ref[:, off:off + l_tile],
                    preferred_element_type=jnp.float32)
        o_ref[...] = (acc + b_ref[...]).astype(o_ref.dtype)

    kern = kernel_patch if use_patch else kernel_taps
    scratch = ([pltpu.VMEM((kk * c_in_pad, l_tile), mm_dtype)]
               if use_patch else [])

    y_flat = pl.pallas_call(
        kern,
        out_shape=jax.ShapeDtypeStruct((c_out_pad, num_tiles * l_tile),
                                       x.dtype),
        grid=(num_tiles,),
        in_specs=[
            # (None, ...) squeezes the tile axis; kernel sees (C_in_pad, l_win)
            pl.BlockSpec((None, c_in_pad, l_win), lambda t: (t, 0, 0)),
            pl.BlockSpec((c_out_pad, kk * c_in_pad), lambda t: (0, 0)),
            pl.BlockSpec((c_out_pad, 1), lambda t: (0, 0)),
        ],
        out_specs=pl.BlockSpec((c_out_pad, l_tile), lambda t: (0, t)),
        scratch_shapes=scratch,
        compiler_params=pltpu.CompilerParams(
            dimension_semantics=("parallel",)),
    )(x_win, w2d, b2d)

    # discard wrap/padding garbage columns + channel padding, back to NCHW
    y = y_flat[:c_out, :l_body].reshape(c_out, n, hp, wp)
    y = jnp.transpose(y, (1, 0, 2, 3))[:, :, :h_out, :w_out]
    return y


def _reference(x, v, g, b, padding):
    # pure-JAX reference (same math as PyTorch weight_norm + F.conv2d)
    norm = jnp.sqrt(jnp.sum(v * v, axis=(1, 2, 3), keepdims=True))
    wgt = v * (g.reshape(-1, 1, 1, 1) / norm)
    y = jax.lax.conv_general_dilated(
        x, wgt, window_strides=(1, 1),
        padding=[(padding, padding), (padding, padding)],
        dimension_numbers=("NCHW", "OIHW", "NCHW"))
    return y + b.reshape(1, -1, 1, 1)


if __name__ == "__main__":
    # Module config: in_channels=4, out_channels=8, kernel_size=3, padding=1
    N, C_in, H, W = 2, 4, 16, 16
    C_out, K, PAD = 8, 3, 1

    key = jax.random.PRNGKey(0)
    kx, kv, kg, kb = jax.random.split(key, 4)
    x = jax.random.normal(kx, (N, C_in, H, W), dtype=jnp.float32)
    v = jax.random.normal(kv, (C_out, C_in, K, K), dtype=jnp.float32) * 0.1
    g = jax.random.uniform(kg, (C_out,), dtype=jnp.float32, minval=0.5, maxval=1.5)
    b = jax.random.normal(kb, (C_out,), dtype=jnp.float32) * 0.1

    y = wn_conv2d(x, v, g, b, PAD)
    y = jax.block_until_ready(y)

    y_ref = _reference(x, v, g, b, PAD)
    assert y.shape == (N, C_out, H, W), y.shape
    # bf16 MXU operands (f32 accumulation) -> mixed-precision tolerance
    np.testing.assert_allclose(np.asarray(y), np.asarray(y_ref),
                               rtol=2e-2, atol=2e-2)

    print("KERNEL_OK")
</pallas_src>

<mosaic_0001>
module attributes {stable_mosaic.version = 11 : i64} {
  func.func @kernel_patch(%arg0: i32, %arg1: memref<1x8x640xbf16, #tpu.memory_space<vmem>>, %arg2: memref<8x72xbf16, #tpu.memory_space<vmem>>, %arg3: memref<8x1xf32, #tpu.memory_space<vmem>>, %arg4: memref<8x512xf32, #tpu.memory_space<vmem>>, %arg5: memref<72x512xbf16, #tpu.memory_space<vmem>>) attributes {dimension_semantics = [#tpu.dimension_semantics<parallel>], iteration_bounds = array<i64: 2>, scalar_prefetch = 0 : i64, scratch_operands = 1 : i64, tpu.core_type = #tpu.core_type<tc>, window_params = [{transform_indices = @transform_0, window_bounds = array<i64: 1, 8, 640>}, {pipeline_mode = #tpu.pipeline_mode<synchronous>, transform_indices = @transform_1, window_bounds = array<i64: 8, 72>}, {pipeline_mode = #tpu.pipeline_mode<synchronous>, transform_indices = @transform_2, window_bounds = array<i64: 8, 1>}, {transform_indices = @transform_3, window_bounds = array<i64: 8, 512>}]} {
    %c0 = arith.constant 0 : index
    %c0_0 = arith.constant 0 : index
    %c0_1 = arith.constant 0 : index
    %0 = vector.load %arg1[%c0, %c0_0, %c0_1] : memref<1x8x640xbf16, #tpu.memory_space<vmem>>, vector<1x8x512xbf16>
    %1 = vector.shape_cast %0 : vector<1x8x512xbf16> to vector<8x512xbf16>
    %c0_2 = arith.constant 0 : index
    %c0_3 = arith.constant 0 : index
    %2 = vector.load %arg5[%c0_2, %c0_3] : memref<72x512xbf16, #tpu.memory_space<vmem>>, vector<8x512xbf16>
    tpu.vector_store %arg5[%c0_2, %c0_3], %1 {strides = array<i32>} : memref<72x512xbf16, #tpu.memory_space<vmem>>, vector<8x512xbf16>,
    %c0_4 = arith.constant 0 : index
    %c0_5 = arith.constant 0 : index
    %c1 = arith.constant 1 : index
    %3 = vector.load %arg1[%c0_4, %c0_5, %c1] : memref<1x8x640xbf16, #tpu.memory_space<vmem>>, vector<1x8x512xbf16>
    %4 = vector.shape_cast %3 : vector<1x8x512xbf16> to vector<8x512xbf16>
    %c8 = arith.constant 8 : index
    %c0_6 = arith.constant 0 : index
    %5 = vector.load %arg5[%c8, %c0_6] : memref<72x512xbf16, #tpu.memory_space<vmem>>, vector<8x512xbf16>
    tpu.vector_store %arg5[%c8, %c0_6], %4 {strides = array<i32>} : memref<72x512xbf16, #tpu.memory_space<vmem>>, vector<8x512xbf16>,
    %c0_7 = arith.constant 0 : index
    %c0_8 = arith.constant 0 : index
    %c2 = arith.constant 2 : index
    %6 = vector.load %arg1[%c0_7, %c0_8, %c2] : memref<1x8x640xbf16, #tpu.memory_space<vmem>>, vector<1x8x512xbf16>
    %7 = vector.shape_cast %6 : vector<1x8x512xbf16> to vector<8x512xbf16>
    %c16 = arith.constant 16 : index
    %c0_9 = arith.constant 0 : index
    %8 = vector.load %arg5[%c16, %c0_9] : memref<72x512xbf16, #tpu.memory_space<vmem>>, vector<8x512xbf16>
    tpu.vector_store %arg5[%c16, %c0_9], %7 {strides = array<i32>} : memref<72x512xbf16, #tpu.memory_space<vmem>>, vector<8x512xbf16>,
    %c0_10 = arith.constant 0 : index
    %c0_11 = arith.constant 0 : index
    %c18 = arith.constant 18 : index
    %9 = vector.load %arg1[%c0_10, %c0_11, %c18] : memref<1x8x640xbf16, #tpu.memory_space<vmem>>, vector<1x8x512xbf16>
    %10 = vector.shape_cast %9 : vector<1x8x512xbf16> to vector<8x512xbf16>
    %c24 = arith.constant 24 : index
    %c0_12 = arith.constant 0 : index
    %11 = vector.load %arg5[%c24, %c0_12] : memref<72x512xbf16, #tpu.memory_space<vmem>>, vector<8x512xbf16>
    tpu.vector_store %arg5[%c24, %c0_12], %10 {strides = array<i32>} : memref<72x512xbf16, #tpu.memory_space<vmem>>, vector<8x512xbf16>,
    %c0_13 = arith.constant 0 : index
    %c0_14 = arith.constant 0 : index
    %c19 = arith.constant 19 : index
    %12 = vector.load %arg1[%c0_13, %c0_14, %c19] : memref<1x8x640xbf16, #tpu.memory_space<vmem>>, vector<1x8x512xbf16>
    %13 = vector.shape_cast %12 : vector<1x8x512xbf16> to vector<8x512xbf16>
    %c32 = arith.constant 32 : index
    %c0_15 = arith.constant 0 : index
    %14 = vector.load %arg5[%c32, %c0_15] : memref<72x512xbf16, #tpu.memory_space<vmem>>, vector<8x512xbf16>
    tpu.vector_store %arg5[%c32, %c0_15], %13 {strides = array<i32>} : memref<72x512xbf16, #tpu.memory_space<vmem>>, vector<8x512xbf16>,
    %c0_16 = arith.constant 0 : index
    %c0_17 = arith.constant 0 : index
    %c20 = arith.constant 20 : index
    %15 = vector.load %arg1[%c0_16, %c0_17, %c20] : memref<1x8x640xbf16, #tpu.memory_space<vmem>>, vector<1x8x512xbf16>
    %16 = vector.shape_cast %15 : vector<1x8x512xbf16> to vector<8x512xbf16>
    %c40 = arith.constant 40 : index
    %c0_18 = arith.constant 0 : index
    %17 = vector.load %arg5[%c40, %c0_18] : memref<72x512xbf16, #tpu.memory_space<vmem>>, vector<8x512xbf16>
    tpu.vector_store %arg5[%c40, %c0_18], %16 {strides = array<i32>} : memref<72x512xbf16, #tpu.memory_space<vmem>>, vector<8x512xbf16>,
    %c0_19 = arith.constant 0 : index
    %c0_20 = arith.constant 0 : index
    %c36 = arith.constant 36 : index
    %18 = vector.load %arg1[%c0_19, %c0_20, %c36] : memref<1x8x640xbf16, #tpu.memory_space<vmem>>, vector<1x8x512xbf16>
    %19 = vector.shape_cast %18 : vector<1x8x512xbf16> to vector<8x512xbf16>
    %c48 = arith.constant 48 : index
    %c0_21 = arith.constant 0 : index
    %20 = vector.load %arg5[%c48, %c0_21] : memref<72x512xbf16, #tpu.memory_space<vmem>>, vector<8x512xbf16>
    tpu.vector_store %arg5[%c48, %c0_21], %19 {strides = array<i32>} : memref<72x512xbf16, #tpu.memory_space<vmem>>, vector<8x512xbf16>,
    %c0_22 = arith.constant 0 : index
    %c0_23 = arith.constant 0 : index
    %c37 = arith.constant 37 : index
    %21 = vector.load %arg1[%c0_22, %c0_23, %c37] : memref<1x8x640xbf16, #tpu.memory_space<vmem>>, vector<1x8x512xbf16>
    %22 = vector.shape_cast %21 : vector<1x8x512xbf16> to vector<8x512xbf16>
    %c56 = arith.constant 56 : index
    %c0_24 = arith.constant 0 : index
    %23 = vector.load %arg5[%c56, %c0_24] : memref<72x512xbf16, #tpu.memory_space<vmem>>, vector<8x512xbf16>
    tpu.vector_store %arg5[%c56, %c0_24], %22 {strides = array<i32>} : memref<72x512xbf16, #tpu.memory_space<vmem>>, vector<8x512xbf16>,
    %c0_25 = arith.constant 0 : index
    %c0_26 = arith.constant 0 : index
    %c38 = arith.constant 38 : index
    %24 = vector.load %arg1[%c0_25, %c0_26, %c38] : memref<1x8x640xbf16, #tpu.memory_space<vmem>>, vector<1x8x512xbf16>
    %25 = vector.shape_cast %24 : vector<1x8x512xbf16> to vector<8x512xbf16>
    %c64 = arith.constant 64 : index
    %c0_27 = arith.constant 0 : index
    %26 = vector.load %arg5[%c64, %c0_27] : memref<72x512xbf16, #tpu.memory_space<vmem>>, vector<8x512xbf16>
    tpu.vector_store %arg5[%c64, %c0_27], %25 {strides = array<i32>} : memref<72x512xbf16, #tpu.memory_space<vmem>>, vector<8x512xbf16>,
    %c0_28 = arith.constant 0 : index
    %c0_29 = arith.constant 0 : index
    %27 = vector.load %arg2[%c0_28, %c0_29] : memref<8x72xbf16, #tpu.memory_space<vmem>>, vector<8x72xbf16>
    %c0_30 = arith.constant 0 : index
    %c0_31 = arith.constant 0 : index
    %28 = vector.load %arg5[%c0_30, %c0_31] : memref<72x512xbf16, #tpu.memory_space<vmem>>, vector<72x512xbf16>
    %cst = arith.constant dense<0.000000e+00> : vector<8x512xf32>
    %29 = tpu.matmul %27, %28, %cst {dimension_numbers = #tpu.dot_dimension_numbers<[1], [0], [0], [1], [0, 0, 1, 1], [], []>} : vector<8x72xbf16>, vector<72x512xbf16>, vector<8x512xf32> -> vector<8x512xf32>
    %c0_32 = arith.constant 0 : index
    %c0_33 = arith.constant 0 : index
    %30 = vector.load %arg3[%c0_32, %c0_33] : memref<8x1xf32, #tpu.memory_space<vmem>>, vector<8x1xf32>
    %31 = vector.broadcast %30 : vector<8x1xf32> to vector<8x512xf32>
    %32 = arith.addf %29, %31 : vector<8x512xf32>
    %c0_34 = arith.constant 0 : index
    %c0_35 = arith.constant 0 : index
    %33 = vector.load %arg4[%c0_34, %c0_35] : memref<8x512xf32, #tpu.memory_space<vmem>>, vector<8x512xf32>
    tpu.vector_store %arg4[%c0_34, %c0_35], %32 {strides = array<i32>} : memref<8x512xf32, #tpu.memory_space<vmem>>, vector<8x512xf32>,
    return
  }
  func.func @transform_0(%arg0: i32) -> (i32, i32, i32) {
    %c0_i32 = arith.constant 0 : i32
    %c0_i32_0 = arith.constant 0 : i32
    %c0_i32_1 = arith.constant 0 : i32
    return %arg0, %c0_i32, %c0_i32_0 : i32, i32, i32
  }
  func.func @transform_1(%arg0: i32) -> (i32, i32) {
    %c0_i32 = arith.constant 0 : i32
    %c0_i32_0 = arith.constant 0 : i32
    %c0_i32_1 = arith.constant 0 : i32
    return %c0_i32, %c0_i32_0 : i32, i32
  }
  func.func @transform_2(%arg0: i32) -> (i32, i32) {
    %c0_i32 = arith.constant 0 : i32
    %c0_i32_0 = arith.constant 0 : i32
    %c0_i32_1 = arith.constant 0 : i32
    return %c0_i32, %c0_i32_0 : i32, i32
  }
  func.func @transform_3(%arg0: i32) -> (i32, i32) {
    %c0_i32 = arith.constant 0 : i32
    %c0_i32_0 = arith.constant 0 : i32
    return %c0_i32, %arg0 : i32, i32
  }
}

</mosaic_0001>

<llo_original>
// kernel: tpu_custom_call.1
$region0: #{tpu_custom_call.1}
  #allocation0 [shape = 'u32[]', space=smem, size = 0x4, offset = 0x4, fixed_abs, tag = 'smem constant byte address 0x4 - core index']
  #allocation1 [shape = 'u32[72,128]{1,0:T(1,128)}', space=vmem, size = 0x9000, scoped, tag = 'internal scratch']
  #allocation2 [shape = 'bf16[72,512]{1,0:T(8,128)(2,1)}', space=vmem, size = 0x12000, scoped, tag = 'scratch operand']
  %s0 = inlined_call_operand.hbm [shape: bf16[2,8,640], index: 0, kind: input, shape index: {}]
  %s1 = inlined_call_operand.vmem [shape: bf16[8,72], index: 1, kind: input, shape index: {}]
  %s2 = inlined_call_operand.vmem [shape: f32[8,1], index: 2, kind: input, shape index: {}]
  %s3 = inlined_call_operand.hbm [shape: f32[8,1024], index: 3, kind: output, shape index: {}]
  %s4 = sld [smem:[#allocation0]]
  $region49: #{tpu_custom_call.1} parent=0
    _
  %s6 = ssub.s32 1, %s4
  %s7 = scalar_select 0, %s6, %s4
  $region1: #{tpu_custom_call.1} parent=0
    #allocation3 [shape = 'u8[20480]{0}', space=vmem, size = 0x5000, scoped, tag = 'input window, operand 0']
    #allocation4 [shape = 's32[2]{0}', space=sflag, size = 0x8, scoped, tag = 'scoped memory for tpu_custom_call.1']
    #allocation5 [shape = 's32[2]{0}', space=sflag, size = 0x8, scoped, tag = 'scoped memory for tpu_custom_call.1']
    #allocation6 [shape = 'u8[32768]{0}', space=vmem, size = 0x8000, scoped, tag = 'output window, operand 0']
    %8 = vsyncpa [#allocation4], 0
    %s9 = scalar_lea.sflag [#allocation4], 1
    %10 = vsyncpa %s9, 0
    %11 = vsyncpa [#allocation5], 0
    %s12 = scalar_lea.sflag [#allocation5], 1
    %13 = vsyncpa %s12, 0
    loop: start=0, step=1, limit=4
    $region2: #{tpu_custom_call.1} parent=1 // loop_pre_header
      _
    $region3: #{tpu_custom_call.1} parent=1 // loop_header
      %s15 = sphi 0, %s19
      %p16 = scmp.ge.s32.totalorder %s15, 4
      %s25 = sphi 0, %s27
      %s28 = sphi 0, %s25
      %s29 = sphi 0, %s28
      %s45 = sphi 0, %s29
      %s49 = sphi 0, %s49
      %s51 = sphi 0, %s49
      %s52 = sphi 0, %s51
      %s66 = sphi 0, %s52
      %s70 = sphi 0, %s70
      %s72 = sphi 0, %s70
      %s73 = sphi 0, %s72
      %s87 = sphi 0, %s73
      %s93 = sphi 0, %s95
      %s96 = sphi 0, %s93
      %s97 = sphi 0, %s96
      %s113 = sphi 0, %s97
    $region4: #{tpu_custom_call.1} parent=1 // loop_header_branch
      %18 = sbr.rel (%p16) target = $region8
    $region5: #{tpu_custom_call.1} parent=1 // loop_body
      %s20 = ssub.s32 %s15, 1
      %s21 = ssub.s32 %s15, 2
      %s22 = sadd.s32 %s15, 1
      %s23 = ssub.s32 %s15, %s22
      %p24 = scmp.eq.s32.totalorder %s23, 0
      %s26 = sadd.s32 %s25, 1
      %s27 = scalar_select %p24, %s25, %s26
      %p30 = pneg %p24
      %p31 = scmp.eq.s32.totalorder %s15, 1
      %p32 = por %p30, %p31
      %p33 = scmp.ne.s32.totalorder %s25, %s28
      %p34 = scmp.eq.s32.totalorder %s15, 0
      %p35 = por %p33, %p34
      %p36 = scmp.ne.s32.totalorder %s25, %s28
      %p37 = scmp.eq.s32.totalorder %s20, 1
      %p38 = por %p36, %p37
      %p39 = scmp.ne.s32.totalorder %s28, %s29
      %p40 = scmp.eq.s32.totalorder %s20, 0
      %p41 = por %p39, %p40
      %p42 = scmp.ne.s32.totalorder %s28, %s29
      %p43 = scmp.eq.s32.totalorder %s21, 1
      %p44 = por %p42, %p43
      %p46 = scmp.ne.s32.totalorder %s29, %s45
      %p47 = scmp.eq.s32.totalorder %s21, 0
      %p48 = por %p46, %p47
      %s50 = sadd.s32 %s49, 1
      %p53 = scmp.eq.s32.totalorder %s15, 1
      %p54 = scmp.ne.s32.totalorder %s49, %s51
      %p55 = scmp.eq.s32.totalorder %s15, 0
      %p56 = por %p54, %p55
      %p57 = scmp.ne.s32.totalorder %s49, %s51
      %p58 = scmp.eq.s32.totalorder %s20, 1
      %p59 = por %p57, %p58
      %p60 = scmp.ne.s32.totalorder %s51, %s52
      %p61 = scmp.eq.s32.totalorder %s20, 0
      %p62 = por %p60, %p61
      %p63 = scmp.ne.s32.totalorder %s51, %s52
      %p64 = scmp.eq.s32.totalorder %s21, 1
      %p65 = por %p63, %p64
      %p67 = scmp.ne.s32.totalorder %s52, %s66
      %p68 = scmp.eq.s32.totalorder %s21, 0
      %p69 = por %p67, %p68
      %s71 = sadd.s32 %s70, 1
      %p74 = scmp.eq.s32.totalorder %s15, 1
      %p75 = scmp.ne.s32.totalorder %s70, %s72
      %p76 = scmp.eq.s32.totalorder %s15, 0
      %p77 = por %p75, %p76
      %p78 = scmp.ne.s32.totalorder %s70, %s72
      %p79 = scmp.eq.s32.totalorder %s20, 1
      %p80 = por %p78, %p79
      %p81 = scmp.ne.s32.totalorder %s72, %s73
      %p82 = scmp.eq.s32.totalorder %s20, 0
      %p83 = por %p81, %p82
      %p84 = scmp.ne.s32.totalorder %s72, %s73
      %p85 = scmp.eq.s32.totalorder %s21, 1
      %p86 = por %p84, %p85
      %p88 = scmp.ne.s32.totalorder %s73, %s87
      %p89 = scmp.eq.s32.totalorder %s21, 0
      %p90 = por %p88, %p89
      %s91 = ssub.s32 %s15, %s22
      %p92 = scmp.eq.s32.totalorder %s91, 0
      %s94 = sadd.s32 %s93, 1
      %s95 = scalar_select %p92, %s93, %s94
      %p98 = pneg %p92
      %p99 = scmp.eq.s32.totalorder %s15, 1
      %p100 = por %p98, %p99
      %p101 = scmp.ne.s32.totalorder %s93, %s96
      %p102 = scmp.eq.s32.totalorder %s15, 0
      %p103 = por %p101, %p102
      %p104 = scmp.ne.s32.totalorder %s93, %s96
      %p105 = scmp.eq.s32.totalorder %s20, 1
      %p106 = por %p104, %p105
      %p107 = scmp.ne.s32.totalorder %s96, %s97
      %p108 = scmp.eq.s32.totalorder %s20, 0
      %p109 = por %p107, %p108
      %p110 = scmp.ne.s32.totalorder %s96, %s97
      %p111 = scmp.eq.s32.totalorder %s21, 1
      %p112 = por %p110, %p111
      %p114 = scmp.ne.s32.totalorder %s97, %s113
      %p115 = scmp.eq.s32.totalorder %s21, 0
      %p116 = por %p114, %p115
      %p117 = scmp.le.s32.totalorder 1, %s15
      %p118 = scmp.lt.s32.totalorder %s15, 3
      %p119 = pnand %p117, %p118
      %p120 = pneg %p119
      // Predicated region
      $region9: #{tpu_custom_call.1} parent=5 // pred_check
        _
      $region10: #{tpu_custom_call.1} parent=5 // pred_check_branch
        %122 = sbr.rel (%p119) target = $region12
      $region11: #{tpu_custom_call.1} parent=5 // pred_region
        %s123 = ssub.s32 %s15, 1
        // Predicated region
        $region13: #{tpu_custom_call.1} parent=11 // pred_check
          %p124 = pneg %p62
        $region14: #{tpu_custom_call.1} parent=11 // pred_check_branch
          %126 = sbr.rel (%p124) target = $region16
        $region15: #{tpu_custom_call.1} parent=11 // pred_region
          _
        $region16: #{tpu_custom_call.1} parent=11 // pred_fallthru
          _
        // Predicated region
        $region17: #{tpu_custom_call.1} parent=11 // pred_check
          %p127 = pneg %p83
        $region18: #{tpu_custom_call.1} parent=11 // pred_check_branch
          %129 = sbr.rel (%p127) target = $region20
        $region19: #{tpu_custom_call.1} parent=11 // pred_region
          _
        $region20: #{tpu_custom_call.1} parent=11 // pred_fallthru
          _
      $region12: #{tpu_custom_call.1} parent=5 // pred_fallthru
        _
      %p130 = scmp.lt.s32.totalorder %s15, 2
      // Predicated region
      $region21: #{tpu_custom_call.1} parent=5 // pred_check
        %p131 = pneg %p130
      $region22: #{tpu_custom_call.1} parent=5 // pred_check_branch
        %133 = sbr.rel (%p131) target = $region24
      $region23: #{tpu_custom_call.1} parent=5 // pred_region
        // Predicated region
        $region25: #{tpu_custom_call.1} parent=23 // pred_check
          %p134 = pneg %p35
        $region26: #{tpu_custom_call.1} parent=23 // pred_check_branch
          %136 = sbr.rel (%p134) target = $region28
        $region27: #{tpu_custom_call.1} parent=23 // pred_region
          %s137 = sand.u32 %s25, 1
          %s138 = scalar_lea.sflag [#allocation4], %s137
          %s139 = sand.u32 %s25, 1
          %s140 = smul.addr %s139, 20
          %s141 = scalar_lea.vmem [#allocation3], %s140
          %143 = vsyncadd %s138, 0
          %s144 = smul.addr %s15, 5
          %s145 = smul.addr %s144, 4
          %s146 = scalar_lea.hbm %s0, %s145
          %s148 = sshll.u32 %s146, 4
          %s149 = int_to_ptr.hbm [resolvable:$true] %s148
          %s150 = sshll.u32 %s141, 4
          %s151 = int_to_ptr.vmem [resolvable:$true] %s150
          %153 = dma.hbm_to_vmem [thread:$0]  %s149, 320, %s151, %s138
        $region28: #{tpu_custom_call.1} parent=23 // pred_fallthru
          _
      $region24: #{tpu_custom_call.1} parent=5 // pred_fallthru
        _
      %p154 = scmp.le.s32.totalorder 1, %s15
      %p155 = scmp.lt.s32.totalorder %s15, 3
      %p156 = pnand %p154, %p155
      %p157 = pneg %p156
      // Predicated region
      $region29: #{tpu_custom_call.1} parent=5 // pred_check
        _
      $region30: #{tpu_custom_call.1} parent=5 // pred_check_branch
        %159 = sbr.rel (%p156) target = $region32
      $region31: #{tpu_custom_call.1} parent=5 // pred_region
        %s160 = ssub.s32 %s15, 1
        %s161 = sand.u32 %s28, 1
        %s162 = scalar_lea.sflag [#allocation4], %s161
        %s163 = sand.u32 %s28, 1
        %s164 = smul.addr %s163, 20
        %s165 = scalar_lea.vmem [#allocation3], %s164
        // Predicated region
        $region33: #{tpu_custom_call.1} parent=31 // pred_check
          %p166 = pneg %p41
        $region34: #{tpu_custom_call.1} parent=31 // pred_check_branch
          %168 = sbr.rel (%p166) target = $region36
        $region35: #{tpu_custom_call.1} parent=31 // pred_region
          %170 = dma.done %s162, 320
        $region36: #{tpu_custom_call.1} parent=31 // pred_fallthru
          _
        %s171 = sand.u32 %s28, 1
        %s172 = scalar_lea.sflag [#allocation4], %s171
        %s173 = sand.u32 %s28, 1
        %s174 = smul.addr %s173, 20
        %s175 = scalar_lea.vmem [#allocation3], %s174
        %p176 = pneg %p41
        %p177 = pneg %p38
        %p178 = pneg %p62
        %p179 = pneg %p59
        %p180 = pneg %p83
        %p181 = pneg %p80
        %p182 = pneg %p109
        %p183 = pneg %p106
        %s184 = sand.u32 %s96, 1
        %s185 = scalar_lea.sflag [#allocation5], %s184
        %s186 = sand.u32 %s96, 1
        %s187 = smul.addr %s186, 32
        %s188 = scalar_lea.vmem [#allocation6], %s187
        %s189 = smul.u32 4, %s20
        %v191 = vld [vmem:[%s165] sm:$0xff]
        %v192 = vld [vmem:[%s165 + $0x8] sm:$0xff]
        %193 = vst [vmem:[#allocation2] sm:$0xff] %v191
        %194 = vst [vmem:[#allocation2 + $0x8] sm:$0xff] %v192
        %v195 = vld [vmem:[%s165] sm:$0xff]
        %v196 = vld [vmem:[%s165 + $0x8] sm:$0xff]
        %v197 = vld [vmem:[%s165 + $0x10] sm:$0xf]
        %201 = vrot.lane.b32.xlu0 %v195, 127
        %v202 = vpop.permute.xlu0 %201
        %203 = vrot.lane.b32.xlu0 %v196, 127
        %v204 = vpop.permute.xlu0 %203
        %205 = vrot.lane.b32.xlu0 %v197, 127
        %v206 = vpop.permute.xlu0 %205
        %v207 = vrot.slane %v202, 4
        %v208 = vrot.slane %v204, 4
        %v209 = vrot.slane %v206, 4
        %vm210 = vcmask 1043456
        %v211 = vsel %vm210, %v207, %v208
        %vm212 = vcmask 1039360
        %v213 = vsel %vm212, %v202, %v211
        %v214 = vsel %vm210, %v208, %v209
        %v215 = vsel %vm212, %v204, %v214
        %218 = vst [vmem:[#allocation2 + $0x10] sm:$0xff] %v213
        %219 = vst [vmem:[#allocation2 + $0x18] sm:$0xff] %v215
        %v220 = vld [vmem:[%s165] sm:$0xff]
        %v221 = vld [vmem:[%s165 + $0x8] sm:$0xff]
        %v222 = vld [vmem:[%s165 + $0x10] sm:$0xf]
        %226 = vrot.lane.b32.xlu0 %v220, 126
        %v227 = vpop.permute.xlu0 %226
        %228 = vrot.lane.b32.xlu0 %v221, 126
        %v229 = vpop.permute.xlu0 %228
        %230 = vrot.lane.b32.xlu0 %v222, 126
        %v231 = vpop.permute.xlu0 %230
        %v232 = vrot.slane %v227, 4
        %v233 = vrot.slane %v229, 4
        %v234 = vrot.slane %v231, 4
        %v235 = vsel %vm210, %v232, %v233
        %vm236 = vcmask 1031168
        %v237 = vsel %vm236, %v227, %v235
        %v238 = vsel %vm210, %v233, %v234
        %v239 = vsel %vm236, %v229, %v238
        %242 = vst [vmem:[#allocation2 + $0x20] sm:$0xff] %v237
        %243 = vst [vmem:[#allocation2 + $0x28] sm:$0xff] %v239
        %v244 = vld [vmem:[%s165] sm:$0xff]
        %v245 = vld [vmem:[%s165 + $0x8] sm:$0xff]
        %v246 = vld [vmem:[%s165 + $0x10] sm:$0xf]
        %250 = vrot.lane.b32.xlu0 %v244, 110
        %v251 = vpop.permute.xlu0 %250
        %252 = vrot.lane.b32.xlu0 %v245, 110
        %v253 = vpop.permute.xlu0 %252
        %254 = vrot.lane.b32.xlu0 %v246, 110
        %v255 = vpop.permute.xlu0 %254
        %v256 = vrot.slane %v251, 4
        %v257 = vrot.slane %v253, 4
        %v258 = vrot.slane %v255, 4
        %v259 = vsel %vm210, %v256, %v257
        %vm260 = vcmask 900096
        %v261 = vsel %vm260, %v251, %v259
        %v262 = vsel %vm210, %v257, %v258
        %v263 = vsel %vm260, %v253, %v262
        %266 = vst [vmem:[#allocation2 + $0x30] sm:$0xff] %v261
        %267 = vst [vmem:[#allocation2 + $0x38] sm:$0xff] %v263
        %v268 = vld [vmem:[%s165] sm:$0xff]
        %v269 = vld [vmem:[%s165 + $0x8] sm:$0xff]
        %v270 = vld [vmem:[%s165 + $0x10] sm:$0xf]
        %274 = vrot.lane.b32.xlu0 %v268, 109
        %v275 = vpop.permute.xlu0 %274
        %276 = vrot.lane.b32.xlu0 %v269, 109
        %v277 = vpop.permute.xlu0 %276
        %278 = vrot.lane.b32.xlu0 %v270, 109
        %v279 = vpop.permute.xlu0 %278
        %v280 = vrot.slane %v275, 4
        %v281 = vrot.slane %v277, 4
        %v282 = vrot.slane %v279, 4
        %v283 = vsel %vm210, %v280, %v281
        %vm284 = vcmask 891904
        %v285 = vsel %vm284, %v275, %v283
        %v286 = vsel %vm210, %v281, %v282
        %v287 = vsel %vm284, %v277, %v286
        %290 = vst [vmem:[#allocation2 + $0x40] sm:$0xff] %v285
        %291 = vst [vmem:[#allocation2 + $0x48] sm:$0xff] %v287
        %v292 = vld [vmem:[%s165] sm:$0xff]
        %v293 = vld [vmem:[%s165 + $0x8] sm:$0xff]
        %v294 = vld [vmem:[%s165 + $0x10] sm:$0xf]
        %298 = vrot.lane.b32.xlu0 %v292, 108
        %v299 = vpop.permute.xlu0 %298
        %300 = vrot.lane.b32.xlu0 %v293, 108
        %v301 = vpop.permute.xlu0 %300
        %302 = vrot.lane.b32.xlu0 %v294, 108
        %v303 = vpop.permute.xlu0 %302
        %v304 = vrot.slane %v299, 4
        %v305 = vrot.slane %v301, 4
        %v306 = vrot.slane %v303, 4
        %v307 = vsel %vm210, %v304, %v305
        %vm308 = vcmask 883712
        %v309 = vsel %vm308, %v299, %v307
        %v310 = vsel %vm210, %v305, %v306
        %v311 = vsel %vm308, %v301, %v310
        %314 = vst [vmem:[#allocation2 + $0x50] sm:$0xff] %v309
        %315 = vst [vmem:[#allocation2 + $0x58] sm:$0xff] %v311
        %v316 = vld [vmem:[%s165] sm:$0xff]
        %v317 = vld [vmem:[%s165 + $0x8] sm:$0xff]
        %v318 = vld [vmem:[%s165 + $0x10] sm:$0xf]
        %322 = vrot.lane.b32.xlu0 %v316, 92
        %v323 = vpop.permute.xlu0 %322
        %324 = vrot.lane.b32.xlu0 %v317, 92
        %v325 = vpop.permute.xlu0 %324
        %326 = vrot.lane.b32.xlu0 %v318, 92
        %v327 = vpop.permute.xlu0 %326
        %v328 = vrot.slane %v323, 4
        %v329 = vrot.slane %v325, 4
        %v330 = vrot.slane %v327, 4
        %v331 = vsel %vm210, %v328, %v329
        %vm332 = vcmask 752640
        %v333 = vsel %vm332, %v323, %v331
        %v334 = vsel %vm210, %v329, %v330
        %v335 = vsel %vm332, %v325, %v334
        %338 = vst [vmem:[#allocation2 + $0x60] sm:$0xff] %v333
        %339 = vst [vmem:[#allocation2 + $0x68] sm:$0xff] %v335
        %v340 = vld [vmem:[%s165] sm:$0xff]
        %v341 = vld [vmem:[%s165 + $0x8] sm:$0xff]
        %v342 = vld [vmem:[%s165 + $0x10] sm:$0xf]
        %346 = vrot.lane.b32.xlu0 %v340, 91
        %v347 = vpop.permute.xlu0 %346
        %348 = vrot.lane.b32.xlu0 %v341, 91
        %v349 = vpop.permute.xlu0 %348
        %350 = vrot.lane.b32.xlu0 %v342, 91
        %v351 = vpop.permute.xlu0 %350
        %v352 = vrot.slane %v347, 4
        %v353 = vrot.slane %v349, 4
        %v354 = vrot.slane %v351, 4
        %v355 = vsel %vm210, %v352, %v353
        %vm356 = vcmask 744448
        %v357 = vsel %vm356, %v347, %v355
        %v358 = vsel %vm210, %v353, %v354
        %v359 = vsel %vm356, %v349, %v358
        %362 = vst [vmem:[#allocation2 + $0x70] sm:$0xff] %v357
        %363 = vst [vmem:[#allocation2 + $0x78] sm:$0xff] %v359
        %v364 = vld [vmem:[%s165] sm:$0xff]
        %v365 = vld [vmem:[%s165 + $0x8] sm:$0xff]
        %v366 = vld [vmem:[%s165 + $0x10] sm:$0xf]
        %370 = vrot.lane.b32.xlu0 %v364, 90
        %v371 = vpop.permute.xlu0 %370
        %372 = vrot.lane.b32.xlu0 %v365, 90
        %v373 = vpop.permute.xlu0 %372
        %374 = vrot.lane.b32.xlu0 %v366, 90
        %v375 = vpop.permute.xlu0 %374
        %v376 = vrot.slane %v371, 4
        %v377 = vrot.slane %v373, 4
        %v378 = vrot.slane %v375, 4
        %v379 = vsel %vm210, %v376, %v377
        %vm380 = vcmask 736256
        %v381 = vsel %vm380, %v371, %v379
        %v382 = vsel %vm210, %v377, %v378
        %v383 = vsel %vm380, %v373, %v382
        %386 = vst [vmem:[#allocation2 + $0x80] sm:$0xff] %v381
        %387 = vst [vmem:[#allocation2 + $0x88] sm:$0xff] %v383
        %v388 = vld [vmem:[%s1] sm:$0xf]
        %v389 = vld [vmem:[#allocation2] sm:$0xff]
        %v390 = vld [vmem:[#allocation2 + $0x8] sm:$0xff]
        %v391 = vld [vmem:[#allocation2 + $0x10] sm:$0xff]
        %v392 = vld [vmem:[#allocation2 + $0x18] sm:$0xff]
        %v393 = vld [vmem:[#allocation2 + $0x20] sm:$0xff]
        %v394 = vld [vmem:[#allocation2 + $0x28] sm:$0xff]
        %v395 = vld [vmem:[#allocation2 + $0x30] sm:$0xff]
        %v396 = vld [vmem:[#allocation2 + $0x38] sm:$0xff]
        %v397 = vld [vmem:[#allocation2 + $0x40] sm:$0xff]
        %v398 = vld [vmem:[#allocation2 + $0x48] sm:$0xff]
        %v399 = vld [vmem:[#allocation2 + $0x50] sm:$0xff]
        %v400 = vld [vmem:[#allocation2 + $0x58] sm:$0xff]
        %v401 = vld [vmem:[#allocation2 + $0x60] sm:$0xff]
        %v402 = vld [vmem:[#allocation2 + $0x68] sm:$0xff]
        %v403 = vld [vmem:[#allocation2 + $0x70] sm:$0xff]
        %v404 = vld [vmem:[#allocation2 + $0x78] sm:$0xff]
        %v405 = vld [vmem:[#allocation2 + $0x80] sm:$0xff]
        %v406 = vld [vmem:[#allocation2 + $0x88] sm:$0xff]
        %v407 = vld [vmem:[%s2] sm:$0xff]
        %409 = vset.pattern.permute.xlu0 0
        %410 = vperm.xlu0 %409, %v407
        %v411 = vpop.permute.xlu0 %410
        %v431 = vunpack.c.l.b16 %v389
        %v432 = vunpack.c.h.b16 %v389
        %v433 = vunpack.c.l.b16 %v390
        %v434 = vunpack.c.h.b16 %v390
        %v435 = vunpack.c.l.b16 %v391
        %v436 = vunpack.c.h.b16 %v391
        %v437 = vunpack.c.l.b16 %v392
        %v438 = vunpack.c.h.b16 %v392
        %v439 = vunpack.c.l.b16 %v393
        %v440 = vunpack.c.h.b16 %v393
        %v441 = vunpack.c.l.b16 %v394
        %v442 = vunpack.c.h.b16 %v394
        %v443 = vunpack.c.l.b16 %v395
        %v444 = vunpack.c.h.b16 %v395
        %v445 = vunpack.c.l.b16 %v396
        %v446 = vunpack.c.h.b16 %v396
        %v447 = vunpack.c.l.b16 %v397
        %v448 = vunpack.c.h.b16 %v397
        %v449 = vunpack.c.l.b16 %v398
        %v450 = vunpack.c.h.b16 %v398
        %v451 = vunpack.c.l.b16 %v399
        %v452 = vunpack.c.h.b16 %v399
        %v453 = vunpack.c.l.b16 %v400
        %v454 = vunpack.c.h.b16 %v400
        %v455 = vunpack.c.l.b16 %v401
        %v456 = vunpack.c.h.b16 %v401
        %v457 = vunpack.c.l.b16 %v402
        %v458 = vunpack.c.h.b16 %v402
        %v459 = vunpack.c.l.b16 %v403
        %v460 = vunpack.c.h.b16 %v403
        %v461 = vunpack.c.l.b16 %v404
        %v462 = vunpack.c.h.b16 %v404
        %v463 = vunpack.c.l.b16 %v405
        %v464 = vunpack.c.h.b16 %v405
        %v465 = vunpack.c.l.b16 %v406
        %v466 = vunpack.c.h.b16 %v406
        %v467 = vpack.c.b16 %v435, %v431
        %v468 = vpack.c.b16 %v436, %v432
        %v469 = vpack.c.b16 %v437, %v433
        %v470 = vpack.c.b16 %v438, %v434
        %v471 = vpack.c.b16 %v443, %v439
        %v472 = vpack.c.b16 %v444, %v440
        %v473 = vpack.c.b16 %v445, %v441
        %v474 = vpack.c.b16 %v446, %v442
        %v475 = vpack.c.b16 %v451, %v447
        %v476 = vpack.c.b16 %v452, %v448
        %v477 = vpack.c.b16 %v453, %v449
        %v478 = vpack.c.b16 %v454, %v450
        %v479 = vpack.c.b16 %v459, %v455
        %v480 = vpack.c.b16 %v460, %v456
        %v481 = vpack.c.b16 %v461, %v457
        %v482 = vpack.c.b16 %v462, %v458
        %v483 = vpack.c.b16 %v463, %v463
        %v484 = vpack.c.b16 %v464, %v464
        %v485 = vpack.c.b16 %v465, %v465
        %v486 = vpack.c.b16 %v466, %v466
        %vm503 = vcmask 588800
        %v505 = vsel %vm503, %v388, 0
        %vm507 = vcmask 1043456
        %v509 = vsel %vm507, %v483, 0
        %v512 = vsel %vm507, %v484, 0
        %v515 = vsel %vm507, %v485, 0
        %v518 = vsel %vm507, %v486, 0
        %520 = vmatpush.bf16.msra.mxu0 0
        %521 = vmatpush.bf16.msra.mxu0 0
        %522 = vmatpush.bf16.msra.mxu0 0
        %523 = vmatpush.bf16.msra.mxu0 %v509
        %524 = vmatpush.bf16.msra.mxu0 %v479
        %525 = vmatpush.bf16.msra.mxu0 %v475
        %526 = vmatpush.bf16.msra.mxu0 %v471
        %527 = vmatpush.bf16.msra.mxu0 %v467
        %528 = vmatmul.bf16.gmra.mxu0 %v505
        %v529 = vpop.f32.mrf.mxu0
        %v530 = vadd.f32 %v411, %v529
        %v531 = vpop.f32.mrf.mxu0
        %532 = vdwg.mxu0
        %533 = vmatpush.bf16.msra.mxu0 0
        %534 = vmatpush.bf16.msra.mxu0 0
        %535 = vmatpush.bf16.msra.mxu0 0
        %536 = vmatpush.bf16.msra.mxu0 %v512
        %537 = vmatpush.bf16.msra.mxu0 %v480
        %538 = vmatpush.bf16.msra.mxu0 %v476
        %539 = vmatpush.bf16.msra.mxu0 %v472
        %540 = vmatpush.bf16.msra.mxu0 %v468
        %541 = vmatmul.bf16.gmra.mxu0 %v505
        %v542 = vpop.f32.mrf.mxu0
        %v543 = vadd.f32 %v411, %v542
        %v544 = vpop.f32.mrf.mxu0
        %545 = vdwg.mxu0
        %546 = vmatpush.bf16.msra.mxu0 0
        %547 = vmatpush.bf16.msra.mxu0 0
        %548 = vmatpush.bf16.msra.mxu0 0
        %549 = vmatpush.bf16.msra.mxu0 %v515
        %550 = vmatpush.bf16.msra.mxu0 %v481
        %551 = vmatpush.bf16.msra.mxu0 %v477
        %552 = vmatpush.bf16.msra.mxu0 %v473
        %553 = vmatpush.bf16.msra.mxu0 %v469
        %554 = vmatmul.bf16.gmra.mxu0 %v505
        %v555 = vpop.f32.mrf.mxu0
        %v556 = vadd.f32 %v411, %v555
        %v557 = vpop.f32.mrf.mxu0
        %558 = vdwg.mxu0
        %559 = vmatpush.bf16.msra.mxu0 0
        %560 = vmatpush.bf16.msra.mxu0 0
        %561 = vmatpush.bf16.msra.mxu0 0
        %562 = vmatpush.bf16.msra.mxu0 %v518
        %563 = vmatpush.bf16.msra.mxu0 %v482
        %564 = vmatpush.bf16.msra.mxu0 %v478
        %565 = vmatpush.bf16.msra.mxu0 %v474
        %566 = vmatpush.bf16.msra.mxu0 %v470
        %567 = vmatmul.bf16.gmra.mxu0 %v505
        %v568 = vpop.f32.mrf.mxu0
        %v569 = vadd.f32 %v411, %v568
        %v570 = vpop.f32.mrf.mxu0
        %571 = vdwg.mxu0
        %572 = vst [vmem:[%s188] sm:$0xff] %v530
        %573 = vst [vmem:[%s188 + $0x8] sm:$0xff] %v543
        %574 = vst [vmem:[%s188 + $0x10] sm:$0xff] %v556
        %575 = vst [vmem:[%s188 + $0x18] sm:$0xff] %v569
        %s576 = sand.u32 %s96, 1
        %s577 = scalar_lea.sflag [#allocation5], %s576
        %s578 = sand.u32 %s96, 1
        %s579 = smul.addr %s578, 32
        %s580 = scalar_lea.vmem [#allocation6], %s579
        // Predicated region
        $region37: #{tpu_custom_call.1} parent=31 // pred_check
          %p581 = pneg %p106
        $region38: #{tpu_custom_call.1} parent=31 // pred_check_branch
          %583 = sbr.rel (%p581) target = $region40
        $region39: #{tpu_custom_call.1} parent=31 // pred_region
          %s584 = smul.u32 4, %s20
          %586 = vsyncadd %s577, 0
          %s587 = smul.addr %s584, 8
          %s588 = scalar_lea.hbm %s3, %s587
          %s590 = sshll.u32 %s580, 4
          %s591 = int_to_ptr.vmem [resolvable:$true] %s590
          %s592 = sshll.u32 %s588, 4
          %s593 = int_to_ptr.hbm [resolvable:$true] %s592
          %595 = dma.vmem_to_hbm [thread:$0]  %s591, 512, %s593, %s577
        $region40: #{tpu_custom_call.1} parent=31 // pred_fallthru
          _
      $region32: #{tpu_custom_call.1} parent=5 // pred_fallthru
        _
      %p596 = scmp.le.s32.totalorder 2, %s15
      // Predicated region
      $region41: #{tpu_custom_call.1} parent=5 // pred_check
        %p597 = pneg %p596
      $region42: #{tpu_custom_call.1} parent=5 // pred_check_branch
        %599 = sbr.rel (%p597) target = $region44
      $region43: #{tpu_custom_call.1} parent=5 // pred_region
        %s600 = ssub.s32 %s15, 2
        // Predicated region
        $region45: #{tpu_custom_call.1} parent=43 // pred_check
          %p601 = pneg %p112
        $region46: #{tpu_custom_call.1} parent=43 // pred_check_branch
          %603 = sbr.rel (%p601) target = $region48
        $region47: #{tpu_custom_call.1} parent=43 // pred_region
          %s604 = sand.u32 %s97, 1
          %s605 = scalar_lea.sflag [#allocation5], %s604
          %s606 = sand.u32 %s97, 1
          %s607 = smul.addr %s606, 32
          %s608 = scalar_lea.vmem [#allocation6], %s607
          %610 = dma.done %s605, 512
        $region48: #{tpu_custom_call.1} parent=43 // pred_fallthru
          _
      $region44: #{tpu_custom_call.1} parent=5 // pred_fallthru
        _
    $region6: #{tpu_custom_call.1} parent=1 // loop_footer
      %s19 = sadd.s32 1, %s15
    $region7: #{tpu_custom_call.1} parent=1 // loop_footer_branch
      %14 = sbr.rel target = $region3
    $region8: #{tpu_custom_call.1} parent=1 // loop_exit
      _
    %611 = vsyncpa [#allocation4], 1
    %s612 = scalar_lea.sflag [#allocation4], 1
    %613 = vsyncpa %s612, 1
    %614 = vsyncpa [#allocation5], 1
    %s615 = scalar_lea.sflag [#allocation5], 1
    %616 = vsyncpa %s615, 1

</llo_original>
